<compile_context>
chip_gen: v6e
topology: v6e:2x2x1
jax: 0.10.0
libtpu: 0.0.40
codegen_flags: <defaults>
</compile_context>

<pallas_src>
import jax
import jax.numpy as jnp
from jax.experimental import pallas as pl
from jax.experimental.pallas import tpu as pltpu

_HALO = 128  # lane-aligned halo width (>= K - 1 for any reasonable K)


def meshconv_kernel(xa_ref, xh_ref, w_ref, b_ref, o_ref):
    """One (batch, face-tile) grid step.

    xa_ref: (1, 5, C, Ft)    main input tile (vertex axis outer, faces on lanes)
    xh_ref: (1, 5, C, 128)   halo tile = next 128 face columns
    w_ref : (O, K*C)         conv weight, flattened as [o, j*C + c]
    b_ref : (O, 1)           conv bias
    o_ref : (1, 5, O, Ft)    output tile (the 5 symmetric-feature rows outer)
    """
    C = xa_ref.shape[2]
    Ft = o_ref.shape[-1]
    K = w_ref.shape[1] // C

    # Per-vertex (C, Ft + 128) slabs: contiguous views + one aligned lane concat.
    def vert(i):
        return jnp.concatenate([xa_ref[0, i], xh_ref[0, i]], axis=-1)

    v0, v1, v2, v3, v4 = vert(0), vert(1), vert(2), vert(3), vert(4)

    # MeshCNN symmetric features == the conv "H" rows.
    feats = (v0, v1 + v3, v2 + v4, jnp.abs(v1 - v3), jnp.abs(v2 - v4))

    # im2col RHS: rows ordered (tap j, channel c), columns ordered (row h, face).
    cols = []
    for fh in feats:                                            # (C, Ft + 128)
        cols.append(jnp.concatenate([fh[:, j:j + Ft] for j in range(K)], axis=0))
    rhs = jnp.concatenate(cols, axis=1)                         # (K*C, 5*Ft)

    # Single fused MXU matmul; accumulate in f32; bias added once (no per-row
    # broadcast inside a loop).
    acc = jnp.dot(w_ref[...], rhs, preferred_element_type=jnp.float32)
    acc = acc + b_ref[...].astype(jnp.float32)                  # (O, 5*Ft)

    # Lane-dense stores: Ft is a multiple of 128, each row is a contiguous
    # (O, Ft) slab of the output block, sliced at 128-aligned offsets.
    for h in range(5):
        o_ref[0, h, :, :] = acc[:, h * Ft:(h + 1) * Ft].astype(o_ref.dtype)


def _pick_face_tile(wout, ft_max):
    """Face-tile width: multiple of 128, no bigger than needed for small meshes."""
    ft = min(ft_max, pl.cdiv(wout, 128) * 128)
    return max(128, ft)


def mesh_conv(x, weight, bias, *, ft_max=512):
    """MeshConv forward.

    x: (N, C, F, 5); weight: (O, C, 1, K); bias: (O,) -> (N, O, 5, F - K + 1).
    """
    N, C, F, five = x.shape
    assert five == 5, "last dim must be the 5-vertex neighborhood"
    O, C_w, one, K = weight.shape
    assert C_w == C and one == 1
    assert K - 1 <= _HALO
    Wout = F - K + 1
    assert Wout >= 1, "need at least K faces"

    Ft = _pick_face_tile(Wout, ft_max)
    assert Ft % 128 == 0
    T = pl.cdiv(Wout, Ft)                 # number of face tiles
    halo_blocks = Ft // _HALO
    Fp_in = T * Ft + _HALO                # padded input faces (covers last halo)

    # ---- wrapper-side layout plumbing only ----
    x_t = jnp.transpose(x, (0, 3, 1, 2))                          # (N, 5, C, F)
    x_p = jnp.pad(x_t, ((0, 0), (0, 0), (0, 0), (0, Fp_in - F)))  # zero pad faces
    w_k = jnp.transpose(weight[:, :, 0, :], (0, 2, 1)).reshape(O, K * C)
    b_k = bias.reshape(O, 1)

    out = pl.pallas_call(
        meshconv_kernel,
        out_shape=jax.ShapeDtypeStruct((N, 5, O, T * Ft), x.dtype),
        grid_spec=pltpu.PrefetchScalarGridSpec(
            num_scalar_prefetch=0,
            grid=(N, T),
            in_specs=[
                # main face tile
                pl.BlockSpec((1, 5, C, Ft), lambda n, t: (n, 0, 0, t)),
                # 128-wide halo tile starting at the next face tile
                pl.BlockSpec((1, 5, C, _HALO),
                             lambda n, t: (n, 0, 0, (t + 1) * halo_blocks)),
                # grid-invariant weight / bias (constant index maps)
                pl.BlockSpec((O, K * C), lambda n, t: (0, 0)),
                pl.BlockSpec((O, 1), lambda n, t: (0, 0)),
            ],
            out_specs=pl.BlockSpec((1, 5, O, Ft), lambda n, t: (n, 0, 0, t)),
        ),
        compiler_params=pltpu.CompilerParams(
            dimension_semantics=("parallel", "parallel"),
            vmem_limit_bytes=32 * 1024 * 1024,
        ),
    )(x_p, x_p, w_k, b_k)

    # (N, 5, O, T*Ft) -> PyTorch NCHW (N, O, 5, Wout); crop face padding.
    return jnp.transpose(out, (0, 2, 1, 3))[..., :Wout]


def mesh_conv_reference(x, weight, bias):
    """Pure-JAX reference of the PyTorch forward (for validation only)."""
    v0 = x[..., 0]
    v1 = x[..., 1]
    v2 = x[..., 2]
    v3 = x[..., 3]
    v4 = x[..., 4]
    y = jnp.stack(
        [v0, v1 + v3, v2 + v4, jnp.abs(v1 - v3), jnp.abs(v2 - v4)], axis=2
    )  # (N, C, 5, F)
    out = jax.lax.conv_general_dilated(
        y, weight, window_strides=(1, 1), padding="VALID",
        dimension_numbers=("NCHW", "OIHW", "NCHW"),
    )
    return out + bias[None, :, None, None]


if __name__ == "__main__":
    # small shapes consistent with the module's forward contract
    N, C_in, C_out, F, K = 2, 4, 8, 16, 5

    key = jax.random.PRNGKey(0)
    kx, kw, kb = jax.random.split(key, 3)

    x = jax.random.normal(kx, (N, C_in, F, 5), dtype=jnp.float32)
    # deterministic synthetic parameters (Conv2d(C_in, C_out, kernel_size=(1, K)))
    weight = 0.1 * jax.random.normal(kw, (C_out, C_in, 1, K), dtype=jnp.float32)
    bias = 0.1 * jax.random.normal(kb, (C_out,), dtype=jnp.float32)

    out = mesh_conv(x, weight, bias)
    out = jax.block_until_ready(out)

    ref = mesh_conv_reference(x, weight, bias)
    assert out.shape == (N, C_out, 5, F - K + 1), out.shape
    assert jnp.allclose(out, ref, atol=1e-5, rtol=1e-5), (
        float(jnp.max(jnp.abs(out - ref)))
    )
    print("KERNEL_OK")
</pallas_src>

<mosaic_0001>
module attributes {stable_mosaic.version = 11 : i64} {
  func.func @meshconv_kernel(%arg0: i32, %arg1: i32, %arg2: memref<1x5x4x128xf32, #tpu.memory_space<vmem>>, %arg3: memref<1x5x4x128xf32, #tpu.memory_space<vmem>>, %arg4: memref<8x20xf32, #tpu.memory_space<vmem>>, %arg5: memref<8x1xf32, #tpu.memory_space<vmem>>, %arg6: memref<1x5x8x128xf32, #tpu.memory_space<vmem>>) attributes {dimension_semantics = [#tpu.dimension_semantics<parallel>, #tpu.dimension_semantics<parallel>], iteration_bounds = array<i64: 2, 1>, scalar_prefetch = 0 : i64, scratch_operands = 0 : i64, tpu.core_type = #tpu.core_type<tc>, window_params = [{transform_indices = @transform_0, window_bounds = array<i64: 1, 5, 4, 128>}, {transform_indices = @transform_1, window_bounds = array<i64: 1, 5, 4, 128>}, {pipeline_mode = #tpu.pipeline_mode<synchronous>, transform_indices = @transform_2, window_bounds = array<i64: 8, 20>}, {pipeline_mode = #tpu.pipeline_mode<synchronous>, transform_indices = @transform_3, window_bounds = array<i64: 8, 1>}, {transform_indices = @transform_4, window_bounds = array<i64: 1, 5, 8, 128>}]} {
    %c0 = arith.constant 0 : index
    %c0_0 = arith.constant 0 : index
    %c0_1 = arith.constant 0 : index
    %c0_2 = arith.constant 0 : index
    %0 = vector.load %arg2[%c0, %c0_0, %c0_1, %c0_2] : memref<1x5x4x128xf32, #tpu.memory_space<vmem>>, vector<1x1x4x128xf32>
    %1 = vector.shape_cast %0 : vector<1x1x4x128xf32> to vector<4x128xf32>
    %c0_3 = arith.constant 0 : index
    %c0_4 = arith.constant 0 : index
    %c0_5 = arith.constant 0 : index
    %c0_6 = arith.constant 0 : index
    %2 = vector.load %arg3[%c0_3, %c0_4, %c0_5, %c0_6] : memref<1x5x4x128xf32, #tpu.memory_space<vmem>>, vector<1x1x4x128xf32>
    %3 = vector.shape_cast %2 : vector<1x1x4x128xf32> to vector<4x128xf32>
    %4 = tpu.concatenate %1, %3 in 1 : vector<4x128xf32>, vector<4x128xf32> -> vector<4x256xf32>
    %c0_7 = arith.constant 0 : index
    %c1 = arith.constant 1 : index
    %c0_8 = arith.constant 0 : index
    %c0_9 = arith.constant 0 : index
    %5 = vector.load %arg2[%c0_7, %c1, %c0_8, %c0_9] : memref<1x5x4x128xf32, #tpu.memory_space<vmem>>, vector<1x1x4x128xf32>
    %6 = vector.shape_cast %5 : vector<1x1x4x128xf32> to vector<4x128xf32>
    %c0_10 = arith.constant 0 : index
    %c1_11 = arith.constant 1 : index
    %c0_12 = arith.constant 0 : index
    %c0_13 = arith.constant 0 : index
    %7 = vector.load %arg3[%c0_10, %c1_11, %c0_12, %c0_13] : memref<1x5x4x128xf32, #tpu.memory_space<vmem>>, vector<1x1x4x128xf32>
    %8 = vector.shape_cast %7 : vector<1x1x4x128xf32> to vector<4x128xf32>
    %9 = tpu.concatenate %6, %8 in 1 : vector<4x128xf32>, vector<4x128xf32> -> vector<4x256xf32>
    %c0_14 = arith.constant 0 : index
    %c2 = arith.constant 2 : index
    %c0_15 = arith.constant 0 : index
    %c0_16 = arith.constant 0 : index
    %10 = vector.load %arg2[%c0_14, %c2, %c0_15, %c0_16] : memref<1x5x4x128xf32, #tpu.memory_space<vmem>>, vector<1x1x4x128xf32>
    %11 = vector.shape_cast %10 : vector<1x1x4x128xf32> to vector<4x128xf32>
    %c0_17 = arith.constant 0 : index
    %c2_18 = arith.constant 2 : index
    %c0_19 = arith.constant 0 : index
    %c0_20 = arith.constant 0 : index
    %12 = vector.load %arg3[%c0_17, %c2_18, %c0_19, %c0_20] : memref<1x5x4x128xf32, #tpu.memory_space<vmem>>, vector<1x1x4x128xf32>
    %13 = vector.shape_cast %12 : vector<1x1x4x128xf32> to vector<4x128xf32>
    %14 = tpu.concatenate %11, %13 in 1 : vector<4x128xf32>, vector<4x128xf32> -> vector<4x256xf32>
    %c0_21 = arith.constant 0 : index
    %c3 = arith.constant 3 : index
    %c0_22 = arith.constant 0 : index
    %c0_23 = arith.constant 0 : index
    %15 = vector.load %arg2[%c0_21, %c3, %c0_22, %c0_23] : memref<1x5x4x128xf32, #tpu.memory_space<vmem>>, vector<1x1x4x128xf32>
    %16 = vector.shape_cast %15 : vector<1x1x4x128xf32> to vector<4x128xf32>
    %c0_24 = arith.constant 0 : index
    %c3_25 = arith.constant 3 : index
    %c0_26 = arith.constant 0 : index
    %c0_27 = arith.constant 0 : index
    %17 = vector.load %arg3[%c0_24, %c3_25, %c0_26, %c0_27] : memref<1x5x4x128xf32, #tpu.memory_space<vmem>>, vector<1x1x4x128xf32>
    %18 = vector.shape_cast %17 : vector<1x1x4x128xf32> to vector<4x128xf32>
    %19 = tpu.concatenate %16, %18 in 1 : vector<4x128xf32>, vector<4x128xf32> -> vector<4x256xf32>
    %c0_28 = arith.constant 0 : index
    %c4 = arith.constant 4 : index
    %c0_29 = arith.constant 0 : index
    %c0_30 = arith.constant 0 : index
    %20 = vector.load %arg2[%c0_28, %c4, %c0_29, %c0_30] : memref<1x5x4x128xf32, #tpu.memory_space<vmem>>, vector<1x1x4x128xf32>
    %21 = vector.shape_cast %20 : vector<1x1x4x128xf32> to vector<4x128xf32>
    %c0_31 = arith.constant 0 : index
    %c4_32 = arith.constant 4 : index
    %c0_33 = arith.constant 0 : index
    %c0_34 = arith.constant 0 : index
    %22 = vector.load %arg3[%c0_31, %c4_32, %c0_33, %c0_34] : memref<1x5x4x128xf32, #tpu.memory_space<vmem>>, vector<1x1x4x128xf32>
    %23 = vector.shape_cast %22 : vector<1x1x4x128xf32> to vector<4x128xf32>
    %24 = tpu.concatenate %21, %23 in 1 : vector<4x128xf32>, vector<4x128xf32> -> vector<4x256xf32>
    %25 = arith.addf %9, %19 : vector<4x256xf32>
    %26 = arith.addf %14, %24 : vector<4x256xf32>
    %27 = arith.subf %9, %19 : vector<4x256xf32>
    %28 = math.absf %27 : vector<4x256xf32>
    %29 = arith.subf %14, %24 : vector<4x256xf32>
    %30 = math.absf %29 : vector<4x256xf32>
    %31 = vector.extract_strided_slice %4 {offsets = [0, 0], sizes = [4, 128], strides = [1, 1]} : vector<4x256xf32> to vector<4x128xf32>
    %32 = vector.extract_strided_slice %4 {offsets = [0, 1], sizes = [4, 128], strides = [1, 1]} : vector<4x256xf32> to vector<4x128xf32>
    %33 = vector.extract_strided_slice %4 {offsets = [0, 2], sizes = [4, 128], strides = [1, 1]} : vector<4x256xf32> to vector<4x128xf32>
    %34 = vector.extract_strided_slice %4 {offsets = [0, 3], sizes = [4, 128], strides = [1, 1]} : vector<4x256xf32> to vector<4x128xf32>
    %35 = vector.extract_strided_slice %4 {offsets = [0, 4], sizes = [4, 128], strides = [1, 1]} : vector<4x256xf32> to vector<4x128xf32>
    %36 = tpu.concatenate %31, %32, %33, %34, %35 in 0 : vector<4x128xf32>, vector<4x128xf32>, vector<4x128xf32>, vector<4x128xf32>, vector<4x128xf32> -> vector<20x128xf32>
    %37 = vector.extract_strided_slice %25 {offsets = [0, 0], sizes = [4, 128], strides = [1, 1]} : vector<4x256xf32> to vector<4x128xf32>
    %38 = vector.extract_strided_slice %25 {offsets = [0, 1], sizes = [4, 128], strides = [1, 1]} : vector<4x256xf32> to vector<4x128xf32>
    %39 = vector.extract_strided_slice %25 {offsets = [0, 2], sizes = [4, 128], strides = [1, 1]} : vector<4x256xf32> to vector<4x128xf32>
    %40 = vector.extract_strided_slice %25 {offsets = [0, 3], sizes = [4, 128], strides = [1, 1]} : vector<4x256xf32> to vector<4x128xf32>
    %41 = vector.extract_strided_slice %25 {offsets = [0, 4], sizes = [4, 128], strides = [1, 1]} : vector<4x256xf32> to vector<4x128xf32>
    %42 = tpu.concatenate %37, %38, %39, %40, %41 in 0 : vector<4x128xf32>, vector<4x128xf32>, vector<4x128xf32>, vector<4x128xf32>, vector<4x128xf32> -> vector<20x128xf32>
    %43 = vector.extract_strided_slice %26 {offsets = [0, 0], sizes = [4, 128], strides = [1, 1]} : vector<4x256xf32> to vector<4x128xf32>
    %44 = vector.extract_strided_slice %26 {offsets = [0, 1], sizes = [4, 128], strides = [1, 1]} : vector<4x256xf32> to vector<4x128xf32>
    %45 = vector.extract_strided_slice %26 {offsets = [0, 2], sizes = [4, 128], strides = [1, 1]} : vector<4x256xf32> to vector<4x128xf32>
    %46 = vector.extract_strided_slice %26 {offsets = [0, 3], sizes = [4, 128], strides = [1, 1]} : vector<4x256xf32> to vector<4x128xf32>
    %47 = vector.extract_strided_slice %26 {offsets = [0, 4], sizes = [4, 128], strides = [1, 1]} : vector<4x256xf32> to vector<4x128xf32>
    %48 = tpu.concatenate %43, %44, %45, %46, %47 in 0 : vector<4x128xf32>, vector<4x128xf32>, vector<4x128xf32>, vector<4x128xf32>, vector<4x128xf32> -> vector<20x128xf32>
    %49 = vector.extract_strided_slice %28 {offsets = [0, 0], sizes = [4, 128], strides = [1, 1]} : vector<4x256xf32> to vector<4x128xf32>
    %50 = vector.extract_strided_slice %28 {offsets = [0, 1], sizes = [4, 128], strides = [1, 1]} : vector<4x256xf32> to vector<4x128xf32>
    %51 = vector.extract_strided_slice %28 {offsets = [0, 2], sizes = [4, 128], strides = [1, 1]} : vector<4x256xf32> to vector<4x128xf32>
    %52 = vector.extract_strided_slice %28 {offsets = [0, 3], sizes = [4, 128], strides = [1, 1]} : vector<4x256xf32> to vector<4x128xf32>
    %53 = vector.extract_strided_slice %28 {offsets = [0, 4], sizes = [4, 128], strides = [1, 1]} : vector<4x256xf32> to vector<4x128xf32>
    %54 = tpu.concatenate %49, %50, %51, %52, %53 in 0 : vector<4x128xf32>, vector<4x128xf32>, vector<4x128xf32>, vector<4x128xf32>, vector<4x128xf32> -> vector<20x128xf32>
    %55 = vector.extract_strided_slice %30 {offsets = [0, 0], sizes = [4, 128], strides = [1, 1]} : vector<4x256xf32> to vector<4x128xf32>
    %56 = vector.extract_strided_slice %30 {offsets = [0, 1], sizes = [4, 128], strides = [1, 1]} : vector<4x256xf32> to vector<4x128xf32>
    %57 = vector.extract_strided_slice %30 {offsets = [0, 2], sizes = [4, 128], strides = [1, 1]} : vector<4x256xf32> to vector<4x128xf32>
    %58 = vector.extract_strided_slice %30 {offsets = [0, 3], sizes = [4, 128], strides = [1, 1]} : vector<4x256xf32> to vector<4x128xf32>
    %59 = vector.extract_strided_slice %30 {offsets = [0, 4], sizes = [4, 128], strides = [1, 1]} : vector<4x256xf32> to vector<4x128xf32>
    %60 = tpu.concatenate %55, %56, %57, %58, %59 in 0 : vector<4x128xf32>, vector<4x128xf32>, vector<4x128xf32>, vector<4x128xf32>, vector<4x128xf32> -> vector<20x128xf32>
    %61 = tpu.concatenate %36, %42, %48, %54, %60 in 1 : vector<20x128xf32>, vector<20x128xf32>, vector<20x128xf32>, vector<20x128xf32>, vector<20x128xf32> -> vector<20x640xf32>
    %c0_35 = arith.constant 0 : index
    %c0_36 = arith.constant 0 : index
    %62 = vector.load %arg4[%c0_35, %c0_36] : memref<8x20xf32, #tpu.memory_space<vmem>>, vector<8x20xf32>
    %cst = arith.constant dense<0.000000e+00> : vector<8x640xf32>
    %63 = tpu.matmul %62, %61, %cst {dimension_numbers = #tpu.dot_dimension_numbers<[1], [0], [0], [1], [0, 0, 1, 1], [], []>} : vector<8x20xf32>, vector<20x640xf32>, vector<8x640xf32> -> vector<8x640xf32>
    %c0_37 = arith.constant 0 : index
    %c0_38 = arith.constant 0 : index
    %64 = vector.load %arg5[%c0_37, %c0_38] : memref<8x1xf32, #tpu.memory_space<vmem>>, vector<8x1xf32>
    %65 = vector.broadcast %64 : vector<8x1xf32> to vector<8x640xf32>
    %66 = arith.addf %63, %65 : vector<8x640xf32>
    %67 = vector.extract_strided_slice %66 {offsets = [0, 0], sizes = [8, 128], strides = [1, 1]} : vector<8x640xf32> to vector<8x128xf32>
    %c0_39 = arith.constant 0 : index
    %c0_40 = arith.constant 0 : index
    %c0_41 = arith.constant 0 : index
    %c0_42 = arith.constant 0 : index
    %68 = vector.load %arg6[%c0_39, %c0_40, %c0_41, %c0_42] : memref<1x5x8x128xf32, #tpu.memory_space<vmem>>, vector<1x1x8x128xf32>
    %69 = vector.shape_cast %68 : vector<1x1x8x128xf32> to vector<8x128xf32>
    %70 = vector.shape_cast %67 : vector<8x128xf32> to vector<1x1x8x128xf32>
    tpu.vector_store %arg6[%c0_39, %c0_40, %c0_41, %c0_42], %70 {strides = array<i32>} : memref<1x5x8x128xf32, #tpu.memory_space<vmem>>, vector<1x1x8x128xf32>,
    %71 = vector.extract_strided_slice %66 {offsets = [0, 128], sizes = [8, 128], strides = [1, 1]} : vector<8x640xf32> to vector<8x128xf32>
    %c0_43 = arith.constant 0 : index
    %c1_44 = arith.constant 1 : index
    %c0_45 = arith.constant 0 : index
    %c0_46 = arith.constant 0 : index
    %72 = vector.load %arg6[%c0_43, %c1_44, %c0_45, %c0_46] : memref<1x5x8x128xf32, #tpu.memory_space<vmem>>, vector<1x1x8x128xf32>
    %73 = vector.shape_cast %72 : vector<1x1x8x128xf32> to vector<8x128xf32>
    %74 = vector.shape_cast %71 : vector<8x128xf32> to vector<1x1x8x128xf32>
    tpu.vector_store %arg6[%c0_43, %c1_44, %c0_45, %c0_46], %74 {strides = array<i32>} : memref<1x5x8x128xf32, #tpu.memory_space<vmem>>, vector<1x1x8x128xf32>,
    %75 = vector.extract_strided_slice %66 {offsets = [0, 256], sizes = [8, 128], strides = [1, 1]} : vector<8x640xf32> to vector<8x128xf32>
    %c0_47 = arith.constant 0 : index
    %c2_48 = arith.constant 2 : index
    %c0_49 = arith.constant 0 : index
    %c0_50 = arith.constant 0 : index
    %76 = vector.load %arg6[%c0_47, %c2_48, %c0_49, %c0_50] : memref<1x5x8x128xf32, #tpu.memory_space<vmem>>, vector<1x1x8x128xf32>
    %77 = vector.shape_cast %76 : vector<1x1x8x128xf32> to vector<8x128xf32>
    %78 = vector.shape_cast %75 : vector<8x128xf32> to vector<1x1x8x128xf32>
    tpu.vector_store %arg6[%c0_47, %c2_48, %c0_49, %c0_50], %78 {strides = array<i32>} : memref<1x5x8x128xf32, #tpu.memory_space<vmem>>, vector<1x1x8x128xf32>,
    %79 = vector.extract_strided_slice %66 {offsets = [0, 384], sizes = [8, 128], strides = [1, 1]} : vector<8x640xf32> to vector<8x128xf32>
    %c0_51 = arith.constant 0 : index
    %c3_52 = arith.constant 3 : index
    %c0_53 = arith.constant 0 : index
    %c0_54 = arith.constant 0 : index
    %80 = vector.load %arg6[%c0_51, %c3_52, %c0_53, %c0_54] : memref<1x5x8x128xf32, #tpu.memory_space<vmem>>, vector<1x1x8x128xf32>
    %81 = vector.shape_cast %80 : vector<1x1x8x128xf32> to vector<8x128xf32>
    %82 = vector.shape_cast %79 : vector<8x128xf32> to vector<1x1x8x128xf32>
    tpu.vector_store %arg6[%c0_51, %c3_52, %c0_53, %c0_54], %82 {strides = array<i32>} : memref<1x5x8x128xf32, #tpu.memory_space<vmem>>, vector<1x1x8x128xf32>,
    %83 = vector.extract_strided_slice %66 {offsets = [0, 512], sizes = [8, 128], strides = [1, 1]} : vector<8x640xf32> to vector<8x128xf32>
    %c0_55 = arith.constant 0 : index
    %c4_56 = arith.constant 4 : index
    %c0_57 = arith.constant 0 : index
    %c0_58 = arith.constant 0 : index
    %84 = vector.load %arg6[%c0_55, %c4_56, %c0_57, %c0_58] : memref<1x5x8x128xf32, #tpu.memory_space<vmem>>, vector<1x1x8x128xf32>
    %85 = vector.shape_cast %84 : vector<1x1x8x128xf32> to vector<8x128xf32>
    %86 = vector.shape_cast %83 : vector<8x128xf32> to vector<1x1x8x128xf32>
    tpu.vector_store %arg6[%c0_55, %c4_56, %c0_57, %c0_58], %86 {strides = array<i32>} : memref<1x5x8x128xf32, #tpu.memory_space<vmem>>, vector<1x1x8x128xf32>,
    return
  }
  func.func @transform_0(%arg0: i32, %arg1: i32) -> (i32, i32, i32, i32) {
    %c0_i32 = arith.constant 0 : i32
    %c0_i32_0 = arith.constant 0 : i32
    %c0_i32_1 = arith.constant 0 : i32
    return %arg0, %c0_i32, %c0_i32_0, %arg1 : i32, i32, i32, i32
  }
  func.func @transform_1(%arg0: i32, %arg1: i32) -> (i32, i32, i32, i32) {
    %c1_i32 = arith.constant 1 : i32
    %0 = arith.addi %arg1, %c1_i32 : i32
    %c1_i32_0 = arith.constant 1 : i32
    %1 = arith.muli %0, %c1_i32_0 : i32
    %c0_i32 = arith.constant 0 : i32
    %c0_i32_1 = arith.constant 0 : i32
    %c0_i32_2 = arith.constant 0 : i32
    return %arg0, %c0_i32, %c0_i32_1, %1 : i32, i32, i32, i32
  }
  func.func @transform_2(%arg0: i32, %arg1: i32) -> (i32, i32) {
    %c0_i32 = arith.constant 0 : i32
    %c0_i32_0 = arith.constant 0 : i32
    %c0_i32_1 = arith.constant 0 : i32
    return %c0_i32, %c0_i32_0 : i32, i32
  }
  func.func @transform_3(%arg0: i32, %arg1: i32) -> (i32, i32) {
    %c0_i32 = arith.constant 0 : i32
    %c0_i32_0 = arith.constant 0 : i32
    %c0_i32_1 = arith.constant 0 : i32
    return %c0_i32, %c0_i32_0 : i32, i32
  }
  func.func @transform_4(%arg0: i32, %arg1: i32) -> (i32, i32, i32, i32) {
    %c0_i32 = arith.constant 0 : i32
    %c0_i32_0 = arith.constant 0 : i32
    %c0_i32_1 = arith.constant 0 : i32
    return %arg0, %c0_i32, %c0_i32_0, %arg1 : i32, i32, i32, i32
  }
}

</mosaic_0001>

<llo_original>
// kernel: tpu_custom_call.1
$region0: #{tpu_custom_call.1}
  #allocation0 [shape = 'u32[]', space=smem, size = 0x4, offset = 0x4, fixed_abs, tag = 'smem constant byte address 0x4 - core index']
  #allocation1 [shape = 'u32[144,128]{1,0:T(1,128)}', space=vmem, size = 0x12000, scoped, tag = 'internal scratch']
  %s0 = inlined_call_operand.hbm [shape: f32[2,5,4,256], index: 0, kind: input, shape index: {}]
  %s1 = inlined_call_operand.hbm [shape: f32[2,5,4,256], index: 1, kind: input, shape index: {}]
  %s2 = inlined_call_operand.vmem [shape: f32[8,20], index: 2, kind: input, shape index: {}]
  %s3 = inlined_call_operand.vmem [shape: f32[8,1], index: 3, kind: input, shape index: {}]
  %s4 = inlined_call_operand.hbm [shape: f32[2,5,8,128], index: 4, kind: output, shape index: {}]
  %s5 = sld [smem:[#allocation0]]
  $region57: #{tpu_custom_call.1} parent=0
    _
  %s7 = ssub.s32 1, %s5
  %s8 = scalar_select 0, %s7, %s5
  $region1: #{tpu_custom_call.1} parent=0
    #allocation2 [shape = 'u8[20480]{0}', space=vmem, size = 0x5000, scoped, tag = 'input window, operand 0']
    #allocation3 [shape = 's32[2]{0}', space=sflag, size = 0x8, scoped, tag = 'scoped memory for tpu_custom_call.1']
    #allocation4 [shape = 's32[2]{0}', space=sflag, size = 0x8, scoped, tag = 'scoped memory for tpu_custom_call.1']
    #allocation5 [shape = 'u8[20480]{0}', space=vmem, size = 0x5000, scoped, tag = 'input window, operand 1']
    #allocation6 [shape = 's32[2]{0}', space=sflag, size = 0x8, scoped, tag = 'scoped memory for tpu_custom_call.1']
    #allocation7 [shape = 'u8[40960]{0}', space=vmem, size = 0xa000, scoped, tag = 'output window, operand 0']
    %9 = vsyncpa [#allocation3], 0
    %s10 = scalar_lea.sflag [#allocation3], 1
    %11 = vsyncpa %s10, 0
    %12 = vsyncpa [#allocation6], 0
    %s13 = scalar_lea.sflag [#allocation6], 1
    %14 = vsyncpa %s13, 0
    %15 = vsyncpa [#allocation4], 0
    %s16 = scalar_lea.sflag [#allocation4], 1
    %17 = vsyncpa %s16, 0
    loop: start=0, step=1, limit=4
    $region2: #{tpu_custom_call.1} parent=1 // loop_pre_header
      _
    $region3: #{tpu_custom_call.1} parent=1 // loop_header
      %s19 = sphi 0, %s23
      %p20 = scmp.ge.s32.totalorder %s19, 4
      %s26 = sphi 0, %s38
      %s27 = sphi 0, %s34
      %s28 = sphi 0, %s26
      %s29 = sphi 0, %s27
      %s30 = sphi 0, %s28
      %s31 = sphi 0, %s29
      %s43 = sphi 0, %s45
      %s46 = sphi 0, %s43
      %s47 = sphi 0, %s46
      %s63 = sphi 0, %s47
      %s73 = sphi 0, %s75
      %s76 = sphi 0, %s73
      %s77 = sphi 0, %s76
      %s93 = sphi 0, %s77
      %s97 = sphi 0, %s97
      %s99 = sphi 0, %s97
      %s100 = sphi 0, %s99
      %s114 = sphi 0, %s100
      %s118 = sphi 0, %s118
      %s120 = sphi 0, %s118
      %s121 = sphi 0, %s120
      %s135 = sphi 0, %s121
      %s143 = sphi 0, %s145
      %s146 = sphi 0, %s143
      %s147 = sphi 0, %s146
      %s163 = sphi 0, %s147
    $region4: #{tpu_custom_call.1} parent=1 // loop_header_branch
      %22 = sbr.rel (%p20) target = $region8
    $region5: #{tpu_custom_call.1} parent=1 // loop_body
      %s24 = ssub.s32 %s19, 1
      %s25 = ssub.s32 %s19, 2
      %s32 = sadd.s32 1, %s27
      %p33 = scmp.ge.s32.totalorder %s32, 1
      %s34 = scalar_select %p33, 0, %s32
      %s35 = sadd.s32 1, %s26
      %s36 = scalar_select %p33, %s35, %s26
      %p37 = scmp.ge.s32.totalorder %s36, 2
      %s38 = scalar_select %p37, 0, %s36
      %s39 = ssub.s32 %s26, %s38
      %s40 = ssub.s32 %s27, %s34
      %s41 = sor.u32 %s39, %s40
      %p42 = scmp.eq.s32.totalorder %s41, 0
      %s44 = sadd.s32 %s43, 1
      %s45 = scalar_select %p42, %s43, %s44
      %p48 = pneg %p42
      %p49 = scmp.eq.s32.totalorder %s19, 1
      %p50 = por %p48, %p49
      %p51 = scmp.ne.s32.totalorder %s43, %s46
      %p52 = scmp.eq.s32.totalorder %s19, 0
      %p53 = por %p51, %p52
      %p54 = scmp.ne.s32.totalorder %s43, %s46
      %p55 = scmp.eq.s32.totalorder %s24, 1
      %p56 = por %p54, %p55
      %p57 = scmp.ne.s32.totalorder %s46, %s47
      %p58 = scmp.eq.s32.totalorder %s24, 0
      %p59 = por %p57, %p58
      %p60 = scmp.ne.s32.totalorder %s46, %s47
      %p61 = scmp.eq.s32.totalorder %s25, 1
      %p62 = por %p60, %p61
      %p64 = scmp.ne.s32.totalorder %s47, %s63
      %p65 = scmp.eq.s32.totalorder %s25, 0
      %p66 = por %p64, %p65
      %s67 = sadd.s32 %s27, 1
      %s68 = sadd.s32 %s34, 1
      %s69 = ssub.s32 %s26, %s38
      %s70 = ssub.s32 %s67, %s68
      %s71 = sor.u32 %s69, %s70
      %p72 = scmp.eq.s32.totalorder %s71, 0
      %s74 = sadd.s32 %s73, 1
      %s75 = scalar_select %p72, %s73, %s74
      %p78 = pneg %p72
      %p79 = scmp.eq.s32.totalorder %s19, 1
      %p80 = por %p78, %p79
      %p81 = scmp.ne.s32.totalorder %s73, %s76
      %p82 = scmp.eq.s32.totalorder %s19, 0
      %p83 = por %p81, %p82
      %p84 = scmp.ne.s32.totalorder %s73, %s76
      %p85 = scmp.eq.s32.totalorder %s24, 1
      %p86 = por %p84, %p85
      %p87 = scmp.ne.s32.totalorder %s76, %s77
      %p88 = scmp.eq.s32.totalorder %s24, 0
      %p89 = por %p87, %p88
      %p90 = scmp.ne.s32.totalorder %s76, %s77
      %p91 = scmp.eq.s32.totalorder %s25, 1
      %p92 = por %p90, %p91
      %p94 = scmp.ne.s32.totalorder %s77, %s93
      %p95 = scmp.eq.s32.totalorder %s25, 0
      %p96 = por %p94, %p95
      %s98 = sadd.s32 %s97, 1
      %p101 = scmp.eq.s32.totalorder %s19, 1
      %p102 = scmp.ne.s32.totalorder %s97, %s99
      %p103 = scmp.eq.s32.totalorder %s19, 0
      %p104 = por %p102, %p103
      %p105 = scmp.ne.s32.totalorder %s97, %s99
      %p106 = scmp.eq.s32.totalorder %s24, 1
      %p107 = por %p105, %p106
      %p108 = scmp.ne.s32.totalorder %s99, %s100
      %p109 = scmp.eq.s32.totalorder %s24, 0
      %p110 = por %p108, %p109
      %p111 = scmp.ne.s32.totalorder %s99, %s100
      %p112 = scmp.eq.s32.totalorder %s25, 1
      %p113 = por %p111, %p112
      %p115 = scmp.ne.s32.totalorder %s100, %s114
      %p116 = scmp.eq.s32.totalorder %s25, 0
      %p117 = por %p115, %p116
      %s119 = sadd.s32 %s118, 1
      %p122 = scmp.eq.s32.totalorder %s19, 1
      %p123 = scmp.ne.s32.totalorder %s118, %s120
      %p124 = scmp.eq.s32.totalorder %s19, 0
      %p125 = por %p123, %p124
      %p126 = scmp.ne.s32.totalorder %s118, %s120
      %p127 = scmp.eq.s32.totalorder %s24, 1
      %p128 = por %p126, %p127
      %p129 = scmp.ne.s32.totalorder %s120, %s121
      %p130 = scmp.eq.s32.totalorder %s24, 0
      %p131 = por %p129, %p130
      %p132 = scmp.ne.s32.totalorder %s120, %s121
      %p133 = scmp.eq.s32.totalorder %s25, 1
      %p134 = por %p132, %p133
      %p136 = scmp.ne.s32.totalorder %s121, %s135
      %p137 = scmp.eq.s32.totalorder %s25, 0
      %p138 = por %p136, %p137
      %s139 = ssub.s32 %s26, %s38
      %s140 = ssub.s32 %s27, %s34
      %s141 = sor.u32 %s139, %s140
      %p142 = scmp.eq.s32.totalorder %s141, 0
      %s144 = sadd.s32 %s143, 1
      %s145 = scalar_select %p142, %s143, %s144
      %p148 = pneg %p142
      %p149 = scmp.eq.s32.totalorder %s19, 1
      %p150 = por %p148, %p149
      %p151 = scmp.ne.s32.totalorder %s143, %s146
      %p152 = scmp.eq.s32.totalorder %s19, 0
      %p153 = por %p151, %p152
      %p154 = scmp.ne.s32.totalorder %s143, %s146
      %p155 = scmp.eq.s32.totalorder %s24, 1
      %p156 = por %p154, %p155
      %p157 = scmp.ne.s32.totalorder %s146, %s147
      %p158 = scmp.eq.s32.totalorder %s24, 0
      %p159 = por %p157, %p158
      %p160 = scmp.ne.s32.totalorder %s146, %s147
      %p161 = scmp.eq.s32.totalorder %s25, 1
      %p162 = por %p160, %p161
      %p164 = scmp.ne.s32.totalorder %s147, %s163
      %p165 = scmp.eq.s32.totalorder %s25, 0
      %p166 = por %p164, %p165
      %p167 = scmp.le.s32.totalorder 1, %s19
      %p168 = scmp.lt.s32.totalorder %s19, 3
      %p169 = pnand %p167, %p168
      %p170 = pneg %p169
      // Predicated region
      $region9: #{tpu_custom_call.1} parent=5 // pred_check
        _
      $region10: #{tpu_custom_call.1} parent=5 // pred_check_branch
        %172 = sbr.rel (%p169) target = $region12
      $region11: #{tpu_custom_call.1} parent=5 // pred_region
        %s173 = ssub.s32 %s19, 1
        // Predicated region
        $region13: #{tpu_custom_call.1} parent=11 // pred_check
          %p174 = pneg %p110
        $region14: #{tpu_custom_call.1} parent=11 // pred_check_branch
          %176 = sbr.rel (%p174) target = $region16
        $region15: #{tpu_custom_call.1} parent=11 // pred_region
          _
        $region16: #{tpu_custom_call.1} parent=11 // pred_fallthru
          _
        // Predicated region
        $region17: #{tpu_custom_call.1} parent=11 // pred_check
          %p177 = pneg %p131
        $region18: #{tpu_custom_call.1} parent=11 // pred_check_branch
          %179 = sbr.rel (%p177) target = $region20
        $region19: #{tpu_custom_call.1} parent=11 // pred_region
          _
        $region20: #{tpu_custom_call.1} parent=11 // pred_fallthru
          _
      $region12: #{tpu_custom_call.1} parent=5 // pred_fallthru
        _
      %p180 = scmp.lt.s32.totalorder %s19, 2
      // Predicated region
      $region21: #{tpu_custom_call.1} parent=5 // pred_check
        %p181 = pneg %p180
      $region22: #{tpu_custom_call.1} parent=5 // pred_check_branch
        %183 = sbr.rel (%p181) target = $region24
      $region23: #{tpu_custom_call.1} parent=5 // pred_region
        // Predicated region
        $region25: #{tpu_custom_call.1} parent=23 // pred_check
          %p184 = pneg %p53
        $region26: #{tpu_custom_call.1} parent=23 // pred_check_branch
          %186 = sbr.rel (%p184) target = $region28
        $region27: #{tpu_custom_call.1} parent=23 // pred_region
          %s187 = sand.u32 %s43, 1
          %s188 = scalar_lea.sflag [#allocation3], %s187
          %s189 = sand.u32 %s43, 1
          %s190 = smul.addr %s189, 20
          %s191 = scalar_lea.vmem [#allocation2], %s190
          %s193 = ssub.s32 320, 320
          %194 = vsyncadd %s188, %s193
          %s195 = smul.addr %s26, 10
          %s196 = sadd.s32 %s27, %s195
          %s197 = smul.addr %s196, 64
          %s198 = scalar_lea.hbm %s0, %s197
          %s199 = sshll.u32 %s191, 4
          %s200 = int_to_ptr.vmem [resolvable:$true] %s199
          %205 = dma.hbm_to_vmem [thread:$0]  %s198, 320, %s200, %s188, 128, 64, 4
        $region28: #{tpu_custom_call.1} parent=23 // pred_fallthru
          _
        // Predicated region
        $region29: #{tpu_custom_call.1} parent=23 // pred_check
          %p206 = pneg %p83
        $region30: #{tpu_custom_call.1} parent=23 // pred_check_branch
          %208 = sbr.rel (%p206) target = $region32
        $region31: #{tpu_custom_call.1} parent=23 // pred_region
          %s209 = sand.u32 %s73, 1
          %s210 = scalar_lea.sflag [#allocation6], %s209
          %s211 = sand.u32 %s73, 1
          %s212 = smul.addr %s211, 20
          %s213 = scalar_lea.vmem [#allocation5], %s212
          %s214 = sadd.s32 %s27, 1
          %s216 = ssub.s32 320, 320
          %217 = vsyncadd %s210, %s216
          %s218 = smul.addr %s26, 10
          %s219 = sadd.s32 %s214, %s218
          %s220 = smul.addr %s219, 64
          %s221 = scalar_lea.hbm %s1, %s220
          %s222 = sshll.u32 %s213, 4
          %s223 = int_to_ptr.vmem [resolvable:$true] %s222
          %228 = dma.hbm_to_vmem [thread:$0]  %s221, 320, %s223, %s210, 128, 64, 4
        $region32: #{tpu_custom_call.1} parent=23 // pred_fallthru
          _
      $region24: #{tpu_custom_call.1} parent=5 // pred_fallthru
        _
      %p229 = scmp.le.s32.totalorder 1, %s19
      %p230 = scmp.lt.s32.totalorder %s19, 3
      %p231 = pnand %p229, %p230
      %p232 = pneg %p231
      // Predicated region
      $region33: #{tpu_custom_call.1} parent=5 // pred_check
        _
      $region34: #{tpu_custom_call.1} parent=5 // pred_check_branch
        %234 = sbr.rel (%p231) target = $region36
      $region35: #{tpu_custom_call.1} parent=5 // pred_region
        %s235 = ssub.s32 %s19, 1
        %s236 = sand.u32 %s46, 1
        %s237 = scalar_lea.sflag [#allocation3], %s236
        %s238 = sand.u32 %s46, 1
        %s239 = smul.addr %s238, 20
        %s240 = scalar_lea.vmem [#allocation2], %s239
        // Predicated region
        $region37: #{tpu_custom_call.1} parent=35 // pred_check
          %p241 = pneg %p59
        $region38: #{tpu_custom_call.1} parent=35 // pred_check_branch
          %243 = sbr.rel (%p241) target = $region40
        $region39: #{tpu_custom_call.1} parent=35 // pred_region
          %244 = dma.done %s237, 320
        $region40: #{tpu_custom_call.1} parent=35 // pred_fallthru
          _
        %s245 = sand.u32 %s76, 1
        %s246 = scalar_lea.sflag [#allocation6], %s245
        %s247 = sand.u32 %s76, 1
        %s248 = smul.addr %s247, 20
        %s249 = scalar_lea.vmem [#allocation5], %s248
        // Predicated region
        $region41: #{tpu_custom_call.1} parent=35 // pred_check
          %p250 = pneg %p89
        $region42: #{tpu_custom_call.1} parent=35 // pred_check_branch
          %252 = sbr.rel (%p250) target = $region44
        $region43: #{tpu_custom_call.1} parent=35 // pred_region
          %253 = dma.done %s246, 320
        $region44: #{tpu_custom_call.1} parent=35 // pred_fallthru
          _
        %s254 = sand.u32 %s46, 1
        %s255 = scalar_lea.sflag [#allocation3], %s254
        %s256 = sand.u32 %s46, 1
        %s257 = smul.addr %s256, 20
        %s258 = scalar_lea.vmem [#allocation2], %s257
        %p259 = pneg %p59
        %p260 = pneg %p56
        %s261 = sand.u32 %s76, 1
        %s262 = scalar_lea.sflag [#allocation6], %s261
        %s263 = sand.u32 %s76, 1
        %s264 = smul.addr %s263, 20
        %s265 = scalar_lea.vmem [#allocation5], %s264
        %p266 = pneg %p89
        %p267 = pneg %p86
        %p268 = pneg %p110
        %p269 = pneg %p107
        %p270 = pneg %p131
        %p271 = pneg %p128
        %p272 = pneg %p159
        %p273 = pneg %p156
        %s274 = sand.u32 %s146, 1
        %s275 = scalar_lea.sflag [#allocation4], %s274
        %s276 = sand.u32 %s146, 1
        %s277 = smul.addr %s276, 40
        %s278 = scalar_lea.vmem [#allocation7], %s277
        %s279 = sadd.s32 %s29, 1
        %v280 = vld [vmem:[%s240] sm:$0xf]
        %v281 = vld [vmem:[%s249] sm:$0xf]
        %s282 = scalar_lea.vmem %s240, 4 [#allocation2]
        %v283 = vld [vmem:[%s282] sm:$0xf]
        %s284 = scalar_lea.vmem %s249, 4 [#allocation5]
        %v285 = vld [vmem:[%s284] sm:$0xf]
        %s286 = scalar_lea.vmem %s240, 8 [#allocation2]
        %v287 = vld [vmem:[%s286] sm:$0xf]
        %s288 = scalar_lea.vmem %s249, 8 [#allocation5]
        %v289 = vld [vmem:[%s288] sm:$0xf]
        %s290 = scalar_lea.vmem %s240, 12 [#allocation2]
        %v291 = vld [vmem:[%s290] sm:$0xf]
        %s292 = scalar_lea.vmem %s249, 12 [#allocation5]
        %v293 = vld [vmem:[%s292] sm:$0xf]
        %s294 = scalar_lea.vmem %s240, 16 [#allocation2]
        %v295 = vld [vmem:[%s294] sm:$0xf]
        %s296 = scalar_lea.vmem %s249, 16 [#allocation5]
        %v297 = vld [vmem:[%s296] sm:$0xf]
        %v298 = vadd.f32 %v283, %v291
        %v299 = vadd.f32 %v285, %v293
        %v300 = vadd.f32 %v287, %v295
        %v301 = vadd.f32 %v289, %v297
        %v302 = vsub.f32 %v283, %v291
        %v303 = vsub.f32 %v285, %v293
        %v304 = vand.u32 2147483647, %v302
        %v305 = vand.u32 2147483647, %v303
        %v306 = vsub.f32 %v287, %v295
        %v307 = vsub.f32 %v289, %v297
        %v308 = vand.u32 2147483647, %v306
        %v309 = vand.u32 2147483647, %v307
        %v312 = vrot.slane %v280, 4
        %v313 = vrot.slane %v281, 4
        %314 = vrot.lane.b32.xlu0 %v312, 127
        %v315 = vpop.permute.xlu0 %314
        %316 = vrot.lane.b32.xlu0 %v313, 127
        %v317 = vpop.permute.xlu0 %316
        %vm318 = vcmask 1039360
        %v319 = vsel %vm318, %v315, %v317
        %321 = vrot.lane.b32.xlu0 %v280, 126
        %v322 = vpop.permute.xlu0 %321
        %323 = vrot.lane.b32.xlu0 %v281, 126
        %v324 = vpop.permute.xlu0 %323
        %vm325 = vcmask 1031168
        %v326 = vsel %vm325, %v322, %v324
        %328 = vrot.lane.b32.xlu0 %v312, 125
        %v329 = vpop.permute.xlu0 %328
        %330 = vrot.lane.b32.xlu0 %v313, 125
        %v331 = vpop.permute.xlu0 %330
        %vm332 = vcmask 1022976
        %v333 = vsel %vm332, %v329, %v331
        %335 = vrot.lane.b32.xlu0 %v280, 124
        %v336 = vpop.permute.xlu0 %335
        %337 = vrot.lane.b32.xlu0 %v281, 124
        %v338 = vpop.permute.xlu0 %337
        %vm339 = vcmask 1014784
        %v340 = vsel %vm339, %v336, %v338
        %vm341 = vcmask 1043456
        %v342 = vsel %vm341, %v280, %v319
        %v343 = vsel %vm341, %v326, %v333
        %v346 = vrot.slane %v298, 4
        %v347 = vrot.slane %v299, 4
        %348 = vrot.lane.b32.xlu0 %v346, 127
        %v349 = vpop.permute.xlu0 %348
        %350 = vrot.lane.b32.xlu0 %v347, 127
        %v351 = vpop.permute.xlu0 %350
        %v352 = vsel %vm318, %v349, %v351
        %354 = vrot.lane.b32.xlu0 %v298, 126
        %v355 = vpop.permute.xlu0 %354
        %356 = vrot.lane.b32.xlu0 %v299, 126
        %v357 = vpop.permute.xlu0 %356
        %v358 = vsel %vm325, %v355, %v357
        %360 = vrot.lane.b32.xlu0 %v346, 125
        %v361 = vpop.permute.xlu0 %360
        %362 = vrot.lane.b32.xlu0 %v347, 125
        %v363 = vpop.permute.xlu0 %362
        %v364 = vsel %vm332, %v361, %v363
        %366 = vrot.lane.b32.xlu0 %v298, 124
        %v367 = vpop.permute.xlu0 %366
        %368 = vrot.lane.b32.xlu0 %v299, 124
        %v369 = vpop.permute.xlu0 %368
        %v370 = vsel %vm339, %v367, %v369
        %v371 = vsel %vm341, %v298, %v352
        %v372 = vsel %vm341, %v358, %v364
        %v375 = vrot.slane %v300, 4
        %v376 = vrot.slane %v301, 4
        %377 = vrot.lane.b32.xlu0 %v375, 127
        %v378 = vpop.permute.xlu0 %377
        %379 = vrot.lane.b32.xlu0 %v376, 127
        %v380 = vpop.permute.xlu0 %379
        %v381 = vsel %vm318, %v378, %v380
        %383 = vrot.lane.b32.xlu0 %v300, 126
        %v384 = vpop.permute.xlu0 %383
        %385 = vrot.lane.b32.xlu0 %v301, 126
        %v386 = vpop.permute.xlu0 %385
        %v387 = vsel %vm325, %v384, %v386
        %389 = vrot.lane.b32.xlu0 %v375, 125
        %v390 = vpop.permute.xlu0 %389
        %391 = vrot.lane.b32.xlu0 %v376, 125
        %v392 = vpop.permute.xlu0 %391
        %v393 = vsel %vm332, %v390, %v392
        %395 = vrot.lane.b32.xlu0 %v300, 124
        %v396 = vpop.permute.xlu0 %395
        %397 = vrot.lane.b32.xlu0 %v301, 124
        %v398 = vpop.permute.xlu0 %397
        %v399 = vsel %vm339, %v396, %v398
        %v400 = vsel %vm341, %v300, %v381
        %v401 = vsel %vm341, %v387, %v393
        %v404 = vrot.slane %v304, 4
        %v405 = vrot.slane %v305, 4
        %406 = vrot.lane.b32.xlu0 %v404, 127
        %v407 = vpop.permute.xlu0 %406
        %408 = vrot.lane.b32.xlu0 %v405, 127
        %v409 = vpop.permute.xlu0 %408
        %v410 = vsel %vm318, %v407, %v409
        %412 = vrot.lane.b32.xlu0 %v304, 126
        %v413 = vpop.permute.xlu0 %412
        %414 = vrot.lane.b32.xlu0 %v305, 126
        %v415 = vpop.permute.xlu0 %414
        %v416 = vsel %vm325, %v413, %v415
        %418 = vrot.lane.b32.xlu0 %v404, 125
        %v419 = vpop.permute.xlu0 %418
        %420 = vrot.lane.b32.xlu0 %v405, 125
        %v421 = vpop.permute.xlu0 %420
        %v422 = vsel %vm332, %v419, %v421
        %424 = vrot.lane.b32.xlu0 %v304, 124
        %v425 = vpop.permute.xlu0 %424
        %426 = vrot.lane.b32.xlu0 %v305, 124
        %v427 = vpop.permute.xlu0 %426
        %v428 = vsel %vm339, %v425, %v427
        %v429 = vsel %vm341, %v304, %v410
        %v430 = vsel %vm341, %v416, %v422
        %v433 = vrot.slane %v308, 4
        %v434 = vrot.slane %v309, 4
        %435 = vrot.lane.b32.xlu0 %v433, 127
        %v436 = vpop.permute.xlu0 %435
        %437 = vrot.lane.b32.xlu0 %v434, 127
        %v438 = vpop.permute.xlu0 %437
        %v439 = vsel %vm318, %v436, %v438
        %441 = vrot.lane.b32.xlu0 %v308, 126
        %v442 = vpop.permute.xlu0 %441
        %443 = vrot.lane.b32.xlu0 %v309, 126
        %v444 = vpop.permute.xlu0 %443
        %v445 = vsel %vm325, %v442, %v444
        %447 = vrot.lane.b32.xlu0 %v433, 125
        %v448 = vpop.permute.xlu0 %447
        %449 = vrot.lane.b32.xlu0 %v434, 125
        %v450 = vpop.permute.xlu0 %449
        %v451 = vsel %vm332, %v448, %v450
        %453 = vrot.lane.b32.xlu0 %v308, 124
        %v454 = vpop.permute.xlu0 %453
        %455 = vrot.lane.b32.xlu0 %v309, 124
        %v456 = vpop.permute.xlu0 %455
        %v457 = vsel %vm339, %v454, %v456
        %v458 = vsel %vm341, %v308, %v439
        %v459 = vsel %vm341, %v445, %v451
        %v460 = vld [vmem:[%s2] sm:$0xff]
        %v461 = vld [vmem:[%s3] sm:$0xff]
        %463 = vset.pattern.permute.xlu0 0
        %464 = vperm.xlu0 %463, %v461
        %v465 = vpop.permute.xlu0 %464
        %vm467 = vcmask 162816
        %v469 = vsel %vm467, %v460, 0
        %v471 = vsel %vm341, %v340, 0
        %v473 = vsel %vm341, %v370, 0
        %v475 = vsel %vm341, %v399, 0
        %v477 = vsel %vm341, %v428, 0
        %v479 = vsel %vm341, %v457, 0
        %481 = vmatprep.subr.mxu0 0.0
        %482 = vmatpush1.msra.mxu0 0.0
        %483 = vmatprep.subr.mxu0 0.0
        %484 = vmatpush1.msra.mxu0 0.0
        %485 = vmatprep.subr.mxu0 0.0
        %486 = vmatpush1.msra.mxu0 0.0
        %487 = vmatprep.subr.mxu0 0.0
        %488 = vmatpush1.msra.mxu0 0.0
        %489 = vmatprep.subr.mxu0 0.0
        %490 = vmatpush1.msra.mxu0 0.0
        %491 = vmatprep.subr.mxu0 0.0
        %492 = vmatpush1.msra.mxu0 0.0
        %493 = vmatprep.subr.mxu0 0.0
        %494 = vmatpush1.msra.mxu0 0.0
        %495 = vmatprep.subr.mxu0 0.0
        %496 = vmatpush1.msra.mxu0 0.0
        %497 = vmatprep.subr.mxu0 0.0
        %498 = vmatpush1.msra.mxu0 0.0
        %499 = vmatprep.subr.mxu0 0.0
        %500 = vmatpush1.msra.mxu0 0.0
        %501 = vmatprep.subr.mxu0 0.0
        %502 = vmatpush1.msra.mxu0 0.0
        %503 = vmatprep.subr.mxu0 0.0
        %504 = vmatpush1.msra.mxu0 0.0
        %505 = vmatprep.subr.mxu0 0.0
        %506 = vmatpush1.msra.mxu0 0.0
        %507 = vmatprep.subr.mxu0 %v473
        %508 = vmatpush1.msra.mxu0 %v471
        %509 = vmatprep.subr.mxu0 %v372
        %510 = vmatpush1.msra.mxu0 %v343
        %511 = vmatprep.subr.mxu0 %v371
        %512 = vmatpush1.msra.mxu0 %v342
        %513 = vmatprep.subr.mxu0 0.0
        %514 = vmatpush2.msra.mxu0 0.0
        %515 = vmatprep.subr.mxu0 0.0
        %516 = vmatpush2.msra.mxu0 0.0
        %517 = vmatprep.subr.mxu0 0.0
        %518 = vmatpush2.msra.mxu0 0.0
        %519 = vmatprep.subr.mxu0 0.0
        %520 = vmatpush2.msra.mxu0 0.0
        %521 = vmatprep.subr.mxu0 0.0
        %522 = vmatpush2.msra.mxu0 0.0
        %523 = vmatprep.subr.mxu0 0.0
        %524 = vmatpush2.msra.mxu0 0.0
        %525 = vmatprep.subr.mxu0 0.0
        %526 = vmatpush2.msra.mxu0 0.0
        %527 = vmatprep.subr.mxu0 0.0
        %528 = vmatpush2.msra.mxu0 0.0
        %529 = vmatprep.subr.mxu0 0.0
        %530 = vmatpush2.msra.mxu0 0.0
        %531 = vmatprep.subr.mxu0 0.0
        %532 = vmatpush2.msra.mxu0 0.0
        %533 = vmatprep.subr.mxu0 0.0
        %534 = vmatpush2.msra.mxu0 0.0
        %535 = vmatprep.subr.mxu0 0.0
        %536 = vmatpush2.msra.mxu0 0.0
        %537 = vmatprep.subr.mxu0 0.0
        %538 = vmatpush2.msra.mxu0 0.0
        %539 = vmatprep.subr.mxu0 0.0
        %540 = vmatpush2.msra.mxu0 0.0
        %541 = vmatprep.subr.mxu0 0.0
        %542 = vmatpush2.msra.mxu0 0.0
        %543 = vmatprep.subr.mxu0 0.0
        %544 = vmatpush2.msra.mxu0 0.0
        %545 = vmatprep.mubr.f32.mxu0 0.0
        %546 = vmatmul.mubr.f32.gmra.mxu0 %v469
        %v547 = vpop.f32.mrf.mxu0
        %v548 = vadd.f32 %v465, %v547
        %v549 = vpop.f32.mrf.mxu0
        %v550 = vadd.f32 %v465, %v549
        %551 = vdwg.mxu0
        %552 = vmatprep.subr.mxu0 0.0
        %553 = vmatpush1.msra.mxu0 0.0
        %554 = vmatprep.subr.mxu0 0.0
        %555 = vmatpush1.msra.mxu0 0.0
        %556 = vmatprep.subr.mxu0 0.0
        %557 = vmatpush1.msra.mxu0 0.0
        %558 = vmatprep.subr.mxu0 0.0
        %559 = vmatpush1.msra.mxu0 0.0
        %560 = vmatprep.subr.mxu0 0.0
        %561 = vmatpush1.msra.mxu0 0.0
        %562 = vmatprep.subr.mxu0 0.0
        %563 = vmatpush1.msra.mxu0 0.0
        %564 = vmatprep.subr.mxu0 0.0
        %565 = vmatpush1.msra.mxu0 0.0
        %566 = vmatprep.subr.mxu0 0.0
        %567 = vmatpush1.msra.mxu0 0.0
        %568 = vmatprep.subr.mxu0 0.0
        %569 = vmatpush1.msra.mxu0 0.0
        %570 = vmatprep.subr.mxu0 0.0
        %571 = vmatpush1.msra.mxu0 0.0
        %572 = vmatprep.subr.mxu0 0.0
        %573 = vmatpush1.msra.mxu0 0.0
        %574 = vmatprep.subr.mxu0 0.0
        %575 = vmatpush1.msra.mxu0 0.0
        %576 = vmatprep.subr.mxu0 0.0
        %577 = vmatpush1.msra.mxu0 0.0
        %578 = vmatprep.subr.mxu0 %v477
        %579 = vmatpush1.msra.mxu0 %v475
        %580 = vmatprep.subr.mxu0 %v430
        %581 = vmatpush1.msra.mxu0 %v401
        %582 = vmatprep.subr.mxu0 %v429
        %583 = vmatpush1.msra.mxu0 %v400
        %584 = vmatprep.subr.mxu0 0.0
        %585 = vmatpush2.msra.mxu0 0.0
        %586 = vmatprep.subr.mxu0 0.0
        %587 = vmatpush2.msra.mxu0 0.0
        %588 = vmatprep.subr.mxu0 0.0
        %589 = vmatpush2.msra.mxu0 0.0
        %590 = vmatprep.subr.mxu0 0.0
        %591 = vmatpush2.msra.mxu0 0.0
        %592 = vmatprep.subr.mxu0 0.0
        %593 = vmatpush2.msra.mxu0 0.0
        %594 = vmatprep.subr.mxu0 0.0
        %595 = vmatpush2.msra.mxu0 0.0
        %596 = vmatprep.subr.mxu0 0.0
        %597 = vmatpush2.msra.mxu0 0.0
        %598 = vmatprep.subr.mxu0 0.0
        %599 = vmatpush2.msra.mxu0 0.0
        %600 = vmatprep.subr.mxu0 0.0
        %601 = vmatpush2.msra.mxu0 0.0
        %602 = vmatprep.subr.mxu0 0.0
        %603 = vmatpush2.msra.mxu0 0.0
        %604 = vmatprep.subr.mxu0 0.0
        %605 = vmatpush2.msra.mxu0 0.0
        %606 = vmatprep.subr.mxu0 0.0
        %607 = vmatpush2.msra.mxu0 0.0
        %608 = vmatprep.subr.mxu0 0.0
        %609 = vmatpush2.msra.mxu0 0.0
        %610 = vmatprep.subr.mxu0 0.0
        %611 = vmatpush2.msra.mxu0 0.0
        %612 = vmatprep.subr.mxu0 0.0
        %613 = vmatpush2.msra.mxu0 0.0
        %614 = vmatprep.subr.mxu0 0.0
        %615 = vmatpush2.msra.mxu0 0.0
        %616 = vmatprep.mubr.f32.mxu0 0.0
        %617 = vmatmul.mubr.f32.gmra.mxu0 %v469
        %v618 = vpop.f32.mrf.mxu0
        %v619 = vadd.f32 %v465, %v618
        %v620 = vpop.f32.mrf.mxu0
        %v621 = vadd.f32 %v465, %v620
        %622 = vdwg.mxu0
        %623 = vmatprep.subr.mxu0 0.0
        %624 = vmatpush1.msra.mxu0 0.0
        %625 = vmatprep.subr.mxu0 0.0
        %626 = vmatpush1.msra.mxu0 0.0
        %627 = vmatprep.subr.mxu0 0.0
        %628 = vmatpush1.msra.mxu0 0.0
        %629 = vmatprep.subr.mxu0 0.0
        %630 = vmatpush1.msra.mxu0 0.0
        %631 = vmatprep.subr.mxu0 0.0
        %632 = vmatpush1.msra.mxu0 0.0
        %633 = vmatprep.subr.mxu0 0.0
        %634 = vmatpush1.msra.mxu0 0.0
        %635 = vmatprep.subr.mxu0 0.0
        %636 = vmatpush1.msra.mxu0 0.0
        %637 = vmatprep.subr.mxu0 0.0
        %638 = vmatpush1.msra.mxu0 0.0
        %639 = vmatprep.subr.mxu0 0.0
        %640 = vmatpush1.msra.mxu0 0.0
        %641 = vmatprep.subr.mxu0 0.0
        %642 = vmatpush1.msra.mxu0 0.0
        %643 = vmatprep.subr.mxu0 0.0
        %644 = vmatpush1.msra.mxu0 0.0
        %645 = vmatprep.subr.mxu0 0.0
        %646 = vmatpush1.msra.mxu0 0.0
        %647 = vmatprep.subr.mxu0 0.0
        %648 = vmatpush1.msra.mxu0 0.0
        %649 = vmatprep.subr.mxu0 0.0
        %650 = vmatpush1.msra.mxu0 %v479
        %651 = vmatprep.subr.mxu0 0.0
        %652 = vmatpush1.msra.mxu0 %v459
        %653 = vmatprep.subr.mxu0 0.0
        %654 = vmatpush1.msra.mxu0 %v458
        %655 = vmatprep.subr.mxu0 0.0
        %656 = vmatpush2.msra.mxu0 0.0
        %657 = vmatprep.subr.mxu0 0.0
        %658 = vmatpush2.msra.mxu0 0.0
        %659 = vmatprep.subr.mxu0 0.0
        %660 = vmatpush2.msra.mxu0 0.0
        %661 = vmatprep.subr.mxu0 0.0
        %662 = vmatpush2.msra.mxu0 0.0
        %663 = vmatprep.subr.mxu0 0.0
        %664 = vmatpush2.msra.mxu0 0.0
        %665 = vmatprep.subr.mxu0 0.0
        %666 = vmatpush2.msra.mxu0 0.0
        %667 = vmatprep.subr.mxu0 0.0
        %668 = vmatpush2.msra.mxu0 0.0
        %669 = vmatprep.subr.mxu0 0.0
        %670 = vmatpush2.msra.mxu0 0.0
        %671 = vmatprep.subr.mxu0 0.0
        %672 = vmatpush2.msra.mxu0 0.0
        %673 = vmatprep.subr.mxu0 0.0
        %674 = vmatpush2.msra.mxu0 0.0
        %675 = vmatprep.subr.mxu0 0.0
        %676 = vmatpush2.msra.mxu0 0.0
        %677 = vmatprep.subr.mxu0 0.0
        %678 = vmatpush2.msra.mxu0 0.0
        %679 = vmatprep.subr.mxu0 0.0
        %680 = vmatpush2.msra.mxu0 0.0
        %681 = vmatprep.subr.mxu0 0.0
        %682 = vmatpush2.msra.mxu0 0.0
        %683 = vmatprep.subr.mxu0 0.0
        %684 = vmatpush2.msra.mxu0 0.0
        %685 = vmatprep.subr.mxu0 0.0
        %686 = vmatpush2.msra.mxu0 0.0
        %687 = vmatprep.mubr.f32.mxu0 0.0
        %688 = vmatmul.mubr.f32.gmra.mxu0 %v469
        %v689 = vpop.f32.mrf.mxu0
        %v690 = vadd.f32 %v465, %v689
        %v691 = vpop.f32.mrf.mxu0
        %692 = vdwg.mxu0
        %693 = vst [vmem:[%s278] sm:$0xff] %v548
        %s694 = scalar_lea.vmem %s278, 8 [#allocation7]
        %695 = vst [vmem:[%s694] sm:$0xff] %v550
        %s696 = scalar_lea.vmem %s278, 16 [#allocation7]
        %697 = vst [vmem:[%s696] sm:$0xff] %v619
        %s698 = scalar_lea.vmem %s278, 24 [#allocation7]
        %699 = vst [vmem:[%s698] sm:$0xff] %v621
        %s700 = scalar_lea.vmem %s278, 32 [#allocation7]
        %701 = vst [vmem:[%s700] sm:$0xff] %v690
        %s702 = sand.u32 %s146, 1
        %s703 = scalar_lea.sflag [#allocation4], %s702
        %s704 = sand.u32 %s146, 1
        %s705 = smul.addr %s704, 40
        %s706 = scalar_lea.vmem [#allocation7], %s705
        // Predicated region
        $region45: #{tpu_custom_call.1} parent=35 // pred_check
          %p707 = pneg %p156
        $region46: #{tpu_custom_call.1} parent=35 // pred_check_branch
          %709 = sbr.rel (%p707) target = $region48
        $region47: #{tpu_custom_call.1} parent=35 // pred_region
          %s711 = ssub.s32 640, 640
          %712 = vsyncadd %s703, %s711
          %s713 = smul.addr %s28, 5
          %s714 = sadd.s32 %s29, %s713
          %s715 = smul.addr %s714, 128
          %s716 = scalar_lea.hbm %s4, %s715
          %s717 = sshll.u32 %s706, 4
          %s718 = int_to_ptr.vmem [resolvable:$true] %s717
          %723 = dma.vmem_to_hbm [thread:$0]  %s718, 640, %s716, %s703, 128, 128, 8
        $region48: #{tpu_custom_call.1} parent=35 // pred_fallthru
          _
      $region36: #{tpu_custom_call.1} parent=5 // pred_fallthru
        _
      %p724 = scmp.le.s32.totalorder 2, %s19
      // Predicated region
      $region49: #{tpu_custom_call.1} parent=5 // pred_check
        %p725 = pneg %p724
      $region50: #{tpu_custom_call.1} parent=5 // pred_check_branch
        %727 = sbr.rel (%p725) target = $region52
      $region51: #{tpu_custom_call.1} parent=5 // pred_region
        %s728 = ssub.s32 %s19, 2
        // Predicated region
        $region53: #{tpu_custom_call.1} parent=51 // pred_check
          %p729 = pneg %p162
        $region54: #{tpu_custom_call.1} parent=51 // pred_check_branch
          %731 = sbr.rel (%p729) target = $region56
        $region55: #{tpu_custom_call.1} parent=51 // pred_region
          %s732 = sand.u32 %s147, 1
          %s733 = scalar_lea.sflag [#allocation4], %s732
          %s734 = sand.u32 %s147, 1
          %s735 = smul.addr %s734, 40
          %s736 = scalar_lea.vmem [#allocation7], %s735
          %737 = dma.done %s733, 640
        $region56: #{tpu_custom_call.1} parent=51 // pred_fallthru
          _
      $region52: #{tpu_custom_call.1} parent=5 // pred_fallthru
        _
    $region6: #{tpu_custom_call.1} parent=1 // loop_footer
      %s23 = sadd.s32 1, %s19
    $region7: #{tpu_custom_call.1} parent=1 // loop_footer_branch
      %18 = sbr.rel target = $region3
    $region8: #{tpu_custom_call.1} parent=1 // loop_exit
      _
    %738 = vsyncpa [#allocation3], 1
    %s739 = scalar_lea.sflag [#allocation3], 1
    %740 = vsyncpa %s739, 1
    %741 = vsyncpa [#allocation6], 1
    %s742 = scalar_lea.sflag [#allocation6], 1
    %743 = vsyncpa %s742, 1
    %744 = vsyncpa [#allocation4], 1
    %s745 = scalar_lea.sflag [#allocation4], 1
    %746 = vsyncpa %s745, 1

</llo_original>
